<compile_context>
chip_gen: v7x
topology: tpu7x:2x2x1
jax: 0.10.0
libtpu: 0.0.40
codegen_flags: <defaults>
</compile_context>

<pallas_src>
import functools

import jax
import jax.numpy as jnp
from jax import lax
from jax.experimental import pallas as pl
from jax.experimental.pallas import tpu as pltpu

_LANE = 128              # vreg lane width: keep output feature dim lane-dense
_SUBLANE = 8
_SMALL_BYTES = 2 << 20   # <= 2 MiB total f32 footprint -> single full-block kernel


def _round_up(v, m):
    return ((v + m - 1) // m) * m


def _pad_axis(a, axis, multiple):
    pad = (-a.shape[axis]) % multiple
    if pad == 0:
        return a
    widths = [(0, 0)] * a.ndim
    widths[axis] = (0, pad)
    return jnp.pad(a, widths)


def _vmem_capacity_bytes():
    # Trace-time hardware query; fall back to the smallest per-TC VMEM (v7x).
    try:
        return int(pltpu.get_tpu_info().vmem_capacity_bytes)
    except Exception:
        return 64 << 20


# ---------------------------------------------------------------------------
# Shared kernel body: one full-K MXU matmul + broadcast bias add.
#   x: [tm, K]; w: [tn, K] (PyTorch [out, in] layout, contracted on the shared
#   `in` axis -> MXU consumes the transposed rhs natively, no per-tile vxpose);
#   b: [1, tn]; o: [tm, tn].
# Used by both the grid-free small path and the 2-D full-K tiled path.
# ---------------------------------------------------------------------------
def _linear_kernel(x_ref, w_ref, b_ref, o_ref):
    acc = lax.dot_general(
        x_ref[...], w_ref[...],
        dimension_numbers=(((1,), (1,)), ((), ())),
        preferred_element_type=jnp.float32)
    o_ref[...] = (acc + b_ref[...]).astype(o_ref.dtype)


# K-split fallback (K too large for a full-K VMEM tile): the output block is
# resident across the (last, "arbitrary") k axis, so accumulate straight into
# o_ref (f32) -- no scratch accumulator; bias fused on the first k step.
def _linear_ksplit_kernel(x_ref, w_ref, b_ref, o_ref):
    k = pl.program_id(2)
    acc = lax.dot_general(
        x_ref[...], w_ref[...],
        dimension_numbers=(((1,), (1,)), ((), ())),
        preferred_element_type=jnp.float32)

    @pl.when(k == 0)
    def _():
        o_ref[...] = (acc + b_ref[...]).astype(o_ref.dtype)

    @pl.when(k > 0)
    def _():
        o_ref[...] = o_ref[...] + acc.astype(o_ref.dtype)


# ---------------------------------------------------------------------------
# Small path: whole problem fits comfortably in VMEM. No grid, no pipeline
# prologue — one MXU matmul + broadcast bias add, class dim padded to 128 so
# the output store is lane-dense (one-time, tiny host cost; in a real model
# this pad belongs at parameter-init time).
# ---------------------------------------------------------------------------
def _linear_small(x, weight, bias):
    B, _ = x.shape
    N = weight.shape[0]
    wp = _pad_axis(weight, 0, _LANE)                  # [Np, K]
    bp = _pad_axis(bias.reshape(1, N), 1, _LANE)      # [1, Np]
    Np = wp.shape[0]
    out = pl.pallas_call(
        _linear_kernel,
        out_shape=jax.ShapeDtypeStruct((B, Np), x.dtype),
        in_specs=[pl.BlockSpec(memory_space=pltpu.MemorySpace.VMEM)] * 3,
        out_specs=pl.BlockSpec(memory_space=pltpu.MemorySpace.VMEM),
    )(x, wp, bp)
    return out[:, :N]


# ---------------------------------------------------------------------------
# Tiled path for production-sized layers.
# ---------------------------------------------------------------------------
def _linear_tiled(x, weight, bias, *, compute_dtype=None, tk=None):
    M, K = x.shape
    N = weight.shape[0]
    out_dtype = x.dtype

    x_c = x if compute_dtype is None else x.astype(compute_dtype)
    w_c = weight if compute_dtype is None else weight.astype(compute_dtype)
    b2 = bias.reshape(1, N).astype(jnp.float32)

    in_bytes = jnp.dtype(x_c.dtype).itemsize
    out_bytes = jnp.dtype(out_dtype).itemsize

    # Generation-aware budget: ~half of physical VMEM (v5e/v6e 128 MiB, v7x 64 MiB),
    # capped so the scoped limit we request stays modest.
    vmem = _vmem_capacity_bytes()
    budget = min(vmem // 2, 40 << 20)

    # 512x512 output tiles (sweep winner); small enough that M,N > 512 still gives
    # >= 2 "parallel" blocks so both v7x TensorCores get work.
    tm = min(512, _round_up(M, _SUBLANE))
    tn = min(512, _round_up(N, _LANE))

    def working_set(tk_):
        # double-buffered input + output tiles, plus the (tiny) bias tile
        return 2 * ((tm + tn) * tk_ * in_bytes + tm * tn * out_bytes) + 2 * tn * 4

    if tk is None:
        if working_set(K) <= budget:
            tk = K                                   # full K: no reduction grid axis
        else:
            tk_cap = (budget - 2 * tm * tn * out_bytes) // (2 * (tm + tn) * in_bytes)
            tk = max(512, (tk_cap // 512) * 512)
    tk = min(tk, K)

    vmem_limit = int(min(vmem * 3 // 4,
                         max(32 << 20, working_set(tk) + (8 << 20))))
    grid_mn = (pl.cdiv(M, tm), pl.cdiv(N, tn))

    if tk == K:
        # ---- 2-D grid, full-K contraction: one matmul + bias + store per tile.
        # Exact out_shape + pl.cdiv grid -> no host-side M/N pad, no output slice.
        return pl.pallas_call(
            _linear_kernel,
            out_shape=jax.ShapeDtypeStruct((M, N), out_dtype),
            grid=grid_mn,
            in_specs=[
                pl.BlockSpec((tm, K), lambda i, j: (i, 0)),
                # NOTE: bump to pipeline_mode=pl.Buffered(3) on this weight spec if
                # xprof ever shows exposed weight DMA after the larger tiles.
                pl.BlockSpec((tn, K), lambda i, j: (j, 0)),
                pl.BlockSpec((1, tn), lambda i, j: (0, j)),
            ],
            out_specs=pl.BlockSpec((tm, tn), lambda i, j: (i, j)),
            compiler_params=pltpu.CompilerParams(
                dimension_semantics=("parallel", "parallel"),
                vmem_limit_bytes=vmem_limit),
        )(x_c, w_c, b2)

    # ---- 3-D grid with K split: zero-pad K only (OOB K blocks would otherwise
    # feed garbage into the accumulation; M/N partial blocks are just dropped).
    xp = _pad_axis(x_c, 1, tk)
    wp = _pad_axis(w_c, 1, tk)
    Kp = xp.shape[1]
    # TODO(synk): if the layer output ever becomes bf16, reintroduce an f32 VMEM
    # scratch accumulator here (direct o_ref accumulation needs an f32 output).
    return pl.pallas_call(
        _linear_ksplit_kernel,
        out_shape=jax.ShapeDtypeStruct((M, N), out_dtype),
        grid=grid_mn + (Kp // tk,),
        in_specs=[
            pl.BlockSpec((tm, tk), lambda i, j, k: (i, k)),
            pl.BlockSpec((tn, tk), lambda i, j, k: (j, k)),
            pl.BlockSpec((1, tn), lambda i, j, k: (0, j)),
        ],
        out_specs=pl.BlockSpec((tm, tn), lambda i, j, k: (i, j)),
        compiler_params=pltpu.CompilerParams(
            dimension_semantics=("parallel", "parallel", "arbitrary"),
            vmem_limit_bytes=vmem_limit),
    )(xp, wp, b2)


@functools.partial(jax.jit, static_argnames=("compute_dtype",))
def nn_forward(x, weight, bias, *, compute_dtype=None):
    """NN.forward: fc1(x) = x @ W^T + b, weight kept in PyTorch [out, in] layout.

    compute_dtype=jnp.bfloat16 halves operand HBM traffic on the tiled path
    (f32 accumulate / bias / output kept); default None preserves exact f32
    nn.Linear numerics.
    """
    B, K = x.shape
    N = weight.shape[0]
    Np = _round_up(N, _LANE)
    # footprint accounts for the small path's N lane-pad (per the correctness note)
    footprint = 4 * (B * K + Np * K + B * Np + Np)
    if footprint <= _SMALL_BYTES:
        return _linear_small(x, weight, bias)
    return _linear_tiled(x, weight, bias, compute_dtype=compute_dtype)


if __name__ == "__main__":
    input_size = 4
    num_classes = 3
    batch = 8

    key = jax.random.PRNGKey(0)
    kx, kw, kb = jax.random.split(key, 3)

    # Deterministic parameter init, mimicking nn.Linear's U(-1/sqrt(in), 1/sqrt(in)).
    bound = 1.0 / jnp.sqrt(jnp.float32(input_size))
    weight = jax.random.uniform(
        kw, (num_classes, input_size), jnp.float32, -bound, bound)
    bias = jax.random.uniform(kb, (num_classes,), jnp.float32, -bound, bound)
    x = jax.random.normal(kx, (batch, input_size), jnp.float32)

    out = jax.block_until_ready(nn_forward(x, weight, bias))
    ref = x @ weight.T + bias
    assert out.shape == (batch, num_classes)
    assert jnp.allclose(out, ref, atol=1e-4, rtol=1e-4), \
        float(jnp.max(jnp.abs(out - ref)))

    # Production-sized: exercises the 2-D full-K tiled path with partial edge
    # blocks (M=768, N=640 against 512-tiles) and NO host-side padding/slicing.
    k2x, k2w, k2b = jax.random.split(jax.random.PRNGKey(1), 3)
    M2, K2, N2 = 768, 384, 640
    x2 = jax.random.normal(k2x, (M2, K2), jnp.float32)
    w2 = jax.random.normal(k2w, (N2, K2), jnp.float32) * 0.05
    b2 = jax.random.normal(k2b, (N2,), jnp.float32)
    ref2 = x2 @ w2.T + b2

    out2 = jax.block_until_ready(nn_forward(x2, w2, b2))
    assert out2.shape == (M2, N2)
    assert jnp.allclose(out2, ref2, atol=5e-2, rtol=5e-3), \
        float(jnp.max(jnp.abs(out2 - ref2)))

    # Forced K-split path: direct accumulation into the resident f32 output block.
    out3 = jax.block_until_ready(_linear_tiled(x2, w2, b2, tk=128))
    assert jnp.allclose(out3, ref2, atol=5e-2, rtol=5e-3), \
        float(jnp.max(jnp.abs(out3 - ref2)))

    # Optional bf16-operand path (bandwidth optimization; small numerics delta vs f32).
    out4 = jax.block_until_ready(nn_forward(x2, w2, b2, compute_dtype=jnp.bfloat16))
    assert jnp.allclose(out4, ref2, atol=2e-1, rtol=2e-2), \
        float(jnp.max(jnp.abs(out4 - ref2)))

    print("KERNEL_OK")
</pallas_src>

<mosaic_0001>
module attributes {stable_mosaic.version = 11 : i64} {
  func.func @_linear_kernel(%arg0: memref<8x4xf32, #tpu.memory_space<vmem>>, %arg1: memref<128x4xf32, #tpu.memory_space<vmem>>, %arg2: memref<1x128xf32, #tpu.memory_space<vmem>>, %arg3: memref<8x128xf32, #tpu.memory_space<vmem>>) attributes {dimension_semantics = [], scalar_prefetch = 0 : i64, scratch_operands = 0 : i64, tpu.core_type = #tpu.core_type<tc>} {
    %c0 = arith.constant 0 : index
    %c0_0 = arith.constant 0 : index
    %0 = vector.load %arg0[%c0, %c0_0] : memref<8x4xf32, #tpu.memory_space<vmem>>, vector<8x4xf32>
    %c0_1 = arith.constant 0 : index
    %c0_2 = arith.constant 0 : index
    %1 = vector.load %arg1[%c0_1, %c0_2] : memref<128x4xf32, #tpu.memory_space<vmem>>, vector<128x4xf32>
    %cst = arith.constant dense<0.000000e+00> : vector<8x128xf32>
    %2 = tpu.matmul %0, %1, %cst {dimension_numbers = #tpu.dot_dimension_numbers<[1], [1], [0], [0], [0, 0, 1, 0], [], []>} : vector<8x4xf32>, vector<128x4xf32>, vector<8x128xf32> -> vector<8x128xf32>
    %c0_3 = arith.constant 0 : index
    %c0_4 = arith.constant 0 : index
    %3 = vector.load %arg2[%c0_3, %c0_4] : memref<1x128xf32, #tpu.memory_space<vmem>>, vector<1x128xf32>
    %4 = vector.broadcast %3 : vector<1x128xf32> to vector<8x128xf32>
    %5 = arith.addf %2, %4 : vector<8x128xf32>
    %c0_5 = arith.constant 0 : index
    %c0_6 = arith.constant 0 : index
    %6 = vector.load %arg3[%c0_5, %c0_6] : memref<8x128xf32, #tpu.memory_space<vmem>>, vector<8x128xf32>
    tpu.vector_store %arg3[%c0_5, %c0_6], %5 {strides = array<i32>} : memref<8x128xf32, #tpu.memory_space<vmem>>, vector<8x128xf32>,
    return
  }
}

</mosaic_0001>

<llo_original>
// kernel: nn_forward.1
$region0: #{nn_forward.1}
  #allocation0 [shape = 'u32[]', space=smem, size = 0x4, offset = 0x4, fixed_abs, tag = 'smem constant byte address 0x4 - core index']
  #allocation1 [shape = 'u32[144,128]{1,0:T(1,128)}', space=vmem, size = 0x12000, scoped, tag = 'internal scratch']
  %s0 = inlined_call_operand.vmem [shape: f32[8,4], index: 0, kind: input, shape index: {}]
  %s1 = inlined_call_operand.vmem [shape: f32[128,4], index: 1, kind: input, shape index: {}]
  %s2 = inlined_call_operand.vmem [shape: f32[1,128], index: 2, kind: input, shape index: {}]
  %s3 = inlined_call_operand.vmem [shape: f32[8,128], index: 3, kind: output, shape index: {}]
  %s4 = sld [smem:[#allocation0]]
  $region22: #{nn_forward.1} parent=0
    _
  %s6 = ssub.s32 1, %s4
  %s7 = scalar_select 0, %s6, %s4
  // Predicated region
  $region2: #{nn_forward.1} parent=0 // pred_check
    _
  $region3: #{nn_forward.1} parent=0 // pred_check_branch
    %9 = sbr.rel (0) target = $region5
  $region4: #{nn_forward.1} parent=0 // pred_region
    _
  $region5: #{nn_forward.1} parent=0 // pred_fallthru
    _
  // Predicated region
  $region6: #{nn_forward.1} parent=0 // pred_check
    _
  $region7: #{nn_forward.1} parent=0 // pred_check_branch
    %11 = sbr.rel (0) target = $region9
  $region8: #{nn_forward.1} parent=0 // pred_region
    _
  $region9: #{nn_forward.1} parent=0 // pred_fallthru
    _
  // Predicated region
  $region10: #{nn_forward.1} parent=0 // pred_check
    _
  $region11: #{nn_forward.1} parent=0 // pred_check_branch
    %13 = sbr.rel (0) target = $region13
  $region12: #{nn_forward.1} parent=0 // pred_region
    _
  $region13: #{nn_forward.1} parent=0 // pred_fallthru
    _
  %v14 = vld [vmem:[%s0] sm:$0xff]
  %v15 = vld [vmem:[%s1] sm:$0xff]
  %v16 = vld [vmem:[%s1 + $0x8] sm:$0xff]
  %v17 = vld [vmem:[%s1 + $0x10] sm:$0xff]
  %v18 = vld [vmem:[%s1 + $0x18] sm:$0xff]
  %v19 = vld [vmem:[%s1 + $0x20] sm:$0xff]
  %v20 = vld [vmem:[%s1 + $0x28] sm:$0xff]
  %v21 = vld [vmem:[%s1 + $0x30] sm:$0xff]
  %v22 = vld [vmem:[%s1 + $0x38] sm:$0xff]
  %v23 = vld [vmem:[%s1 + $0x40] sm:$0xff]
  %v24 = vld [vmem:[%s1 + $0x48] sm:$0xff]
  %v25 = vld [vmem:[%s1 + $0x50] sm:$0xff]
  %v26 = vld [vmem:[%s1 + $0x58] sm:$0xff]
  %v27 = vld [vmem:[%s1 + $0x60] sm:$0xff]
  %v28 = vld [vmem:[%s1 + $0x68] sm:$0xff]
  %v29 = vld [vmem:[%s1 + $0x70] sm:$0xff]
  %v30 = vld [vmem:[%s1 + $0x78] sm:$0xff]
  %v31 = vld [vmem:[%s2] sm:$0x1]
  %v33 = vlaneseq
  %v34 = vshrl.u32 %v33, 7
  %v35 = vsub.s32 0, %v34
  %v36 = vrot.slane %v31, %v35
  %vm38 = vcmask 31744
  %v40 = vsel %vm38, %v14, 0
  %v43 = vsel %vm38, %v15, 0
  %v46 = vsel %vm38, %v16, 0
  %v49 = vsel %vm38, %v17, 0
  %v52 = vsel %vm38, %v18, 0
  %v55 = vsel %vm38, %v19, 0
  %v58 = vsel %vm38, %v20, 0
  %v61 = vsel %vm38, %v21, 0
  %v64 = vsel %vm38, %v22, 0
  %v67 = vsel %vm38, %v23, 0
  %v70 = vsel %vm38, %v24, 0
  %v73 = vsel %vm38, %v25, 0
  %v76 = vsel %vm38, %v26, 0
  %v79 = vsel %vm38, %v27, 0
  %v82 = vsel %vm38, %v28, 0
  %v85 = vsel %vm38, %v29, 0
  %v88 = vsel %vm38, %v30, 0
  %90 = vmatprep.subr.mxu0 0.0
  %91 = vmatpush1.xpose.msra.mxu0 %v43
  %92 = vmatprep.subr.mxu0 0.0
  %93 = vmatpush1.xpose.msra.mxu0 %v46
  %94 = vmatprep.subr.mxu0 0.0
  %95 = vmatpush1.xpose.msra.mxu0 %v49
  %96 = vmatprep.subr.mxu0 0.0
  %97 = vmatpush1.xpose.msra.mxu0 %v52
  %98 = vmatprep.subr.mxu0 0.0
  %99 = vmatpush1.xpose.msra.mxu0 %v55
  %100 = vmatprep.subr.mxu0 0.0
  %101 = vmatpush1.xpose.msra.mxu0 %v58
  %102 = vmatprep.subr.mxu0 0.0
  %103 = vmatpush1.xpose.msra.mxu0 %v61
  %104 = vmatprep.subr.mxu0 0.0
  %105 = vmatpush1.xpose.msra.mxu0 %v64
  %106 = vmatprep.subr.mxu0 0.0
  %107 = vmatpush1.xpose.msra.mxu0 %v67
  %108 = vmatprep.subr.mxu0 0.0
  %109 = vmatpush1.xpose.msra.mxu0 %v70
  %110 = vmatprep.subr.mxu0 0.0
  %111 = vmatpush1.xpose.msra.mxu0 %v73
  %112 = vmatprep.subr.mxu0 0.0
  %113 = vmatpush1.xpose.msra.mxu0 %v76
  %114 = vmatprep.subr.mxu0 0.0
  %115 = vmatpush1.xpose.msra.mxu0 %v79
  %116 = vmatprep.subr.mxu0 0.0
  %117 = vmatpush1.xpose.msra.mxu0 %v82
  %118 = vmatprep.subr.mxu0 0.0
  %119 = vmatpush1.xpose.msra.mxu0 %v85
  %120 = vmatprep.subr.mxu0 0.0
  %121 = vmatpush1.xpose.msra.mxu0 %v88
  %122 = vmatprep.subr.mxu0 0.0
  %123 = vmatpush1.xpose.msra.mxu0 0.0
  %124 = vmatprep.subr.mxu0 0.0
  %125 = vmatpush1.xpose.msra.mxu0 0.0
  %126 = vmatprep.subr.mxu0 0.0
  %127 = vmatpush1.xpose.msra.mxu0 0.0
  %128 = vmatprep.subr.mxu0 0.0
  %129 = vmatpush1.xpose.msra.mxu0 0.0
  %130 = vmatprep.subr.mxu0 0.0
  %131 = vmatpush1.xpose.msra.mxu0 0.0
  %132 = vmatprep.subr.mxu0 0.0
  %133 = vmatpush1.xpose.msra.mxu0 0.0
  %134 = vmatprep.subr.mxu0 0.0
  %135 = vmatpush1.xpose.msra.mxu0 0.0
  %136 = vmatprep.subr.mxu0 0.0
  %137 = vmatpush1.xpose.msra.mxu0 0.0
  %138 = vmatprep.subr.mxu0 0.0
  %139 = vmatpush1.xpose.msra.mxu0 0.0
  %140 = vmatprep.subr.mxu0 0.0
  %141 = vmatpush1.xpose.msra.mxu0 0.0
  %142 = vmatprep.subr.mxu0 0.0
  %143 = vmatpush1.xpose.msra.mxu0 0.0
  %144 = vmatprep.subr.mxu0 0.0
  %145 = vmatpush1.xpose.msra.mxu0 0.0
  %146 = vmatprep.subr.mxu0 0.0
  %147 = vmatpush1.xpose.msra.mxu0 0.0
  %148 = vmatprep.subr.mxu0 0.0
  %149 = vmatpush1.xpose.msra.mxu0 0.0
  %150 = vmatprep.subr.mxu0 0.0
  %151 = vmatpush1.xpose.msra.mxu0 0.0
  %152 = vmatprep.subr.mxu0 0.0
  %153 = vmatpush1.xpose.msra.mxu0 0.0
  %154 = vmatprep.mubr.f32.mxu0 0.0
  %155 = vmatmul.mubr.f32.gmra.mrb[0].mxu0 %v40
  %v156 = vpop.f32.mrb[0].mxu0
  %v157 = vadd.f32 %v36, %v156
  %v158 = vpop.f32.mrb[0].mxu0
  %159 = vdwg.mxu0
  %160 = vst [vmem:[%s3] sm:$0xff] %v157
  // Predicated region
  $region14: #{nn_forward.1} parent=0 // pred_check
    _
  $region15: #{nn_forward.1} parent=0 // pred_check_branch
    %162 = sbr.rel (0) target = $region17
  $region16: #{nn_forward.1} parent=0 // pred_region
    _
  $region17: #{nn_forward.1} parent=0 // pred_fallthru
    _
  // Predicated region
  $region18: #{nn_forward.1} parent=0 // pred_check
    _
  $region19: #{nn_forward.1} parent=0 // pred_check_branch
    %164 = sbr.rel (0) target = $region21
  $region20: #{nn_forward.1} parent=0 // pred_region
    _
  $region21: #{nn_forward.1} parent=0 // pred_fallthru
    _

</llo_original>
